<compile_context>
chip_gen: v7x
topology: tpu7x:2x2x1
jax: 0.10.0
libtpu: 0.0.40
codegen_flags: <defaults>
</compile_context>

<pallas_src>
import functools

import jax
import jax.numpy as jnp
from jax.experimental import pallas as pl
from jax.experimental.pallas import tpu as pltpu

_LANES = 128
_SUBLANES = 8
_NUM_CORES = 2  # "parallel" leading axis: uses both TCs on v7x, serial elsewhere


def _l2norm_loss_kernel(pred_ref, label_ref, loss_out, mask_out,
                        *, rows, tile_rows, blocks_per_core, needs_mask):
    c = pl.program_id(0)   # core / parallel axis
    i = pl.program_id(1)   # reduction axis

    # Zero this core's partial-sum slabs at the start of its reduction sweep.
    @pl.when(i == 0)
    def _():
        loss_out[...] = jnp.zeros_like(loss_out)
        mask_out[...] = jnp.zeros_like(mask_out)

    p = pred_ref[...].astype(jnp.float32)
    l = label_ref[...].astype(jnp.float32)
    diff = p - l
    cond = jnp.abs(diff) >= 0.1

    if needs_mask:
        # Logical (unclamped) global row of every element in this tile.
        # Rows beyond the real array (ragged tail of a partial block, or an
        # entire clamped/duplicated block on the second core) contribute 0.
        block_id = c * blocks_per_core + i
        row_in_tile = jax.lax.broadcasted_iota(jnp.int32, (tile_rows, _LANES), 0)
        valid = (block_id * tile_rows + row_in_tile) < rows
        cond = jnp.logical_and(cond, valid)

    loss = jnp.where(cond, jnp.exp(l) * diff * diff, 0.0)
    msk = jnp.where(cond, 1.0, 0.0)

    # vreg-shaped accumulation: pure VALU tree-add over (8,128) vregs; the
    # single cross-lane reduce happens once, outside the kernel.
    loss_out[...] += loss.reshape(-1, _SUBLANES, _LANES).sum(axis=0)[None]
    mask_out[...] += msk.reshape(-1, _SUBLANES, _LANES).sum(axis=0)[None]


def l2norm_loss(pred_map, label_map, *, tile_rows=1024):
    assert pred_map.shape == label_map.shape
    n = pred_map.size

    p_flat = pred_map.reshape(-1)
    l_flat = label_map.reshape(-1)

    # Only if n is not a multiple of the 128-lane width do we pad, and only by
    # <128 zeros.  Zero padding is safe: |0-0| < 0.1 => contributes 0 to both
    # the loss sum and the mask sum.
    rem = n % _LANES
    if rem:
        pad = _LANES - rem
        p_flat = jnp.pad(p_flat, (0, pad))
        l_flat = jnp.pad(l_flat, (0, pad))

    rows = p_flat.size // _LANES
    p2d = p_flat.reshape(rows, _LANES)
    l2d = l_flat.reshape(rows, _LANES)

    # Tile sizing: big streaming tiles (multiple of 16 rows -> bf16-safe),
    # capped to the (rounded-up) array so blocks never exceed the array.
    tile_rows = min(tile_rows, ((rows + 15) // 16) * 16)
    blocks = -(-rows // tile_rows)
    blocks_per_core = -(-blocks // _NUM_CORES)
    # Masking is needed if the last block is partial or the per-core split
    # over-provisions grid steps (those steps read a clamped duplicate block
    # whose contribution is masked to zero in the kernel).
    needs_mask = (blocks * tile_rows != rows) or (_NUM_CORES * blocks_per_core != blocks)
    max_block = blocks - 1

    def in_map(c, i):
        # Clamp so the DMA never targets a fully out-of-bounds block; the
        # in-kernel mask (built from the *unclamped* block id) zeroes any
        # duplicated contribution.
        return (jnp.minimum(c * blocks_per_core + i, max_block), 0)

    kernel = functools.partial(
        _l2norm_loss_kernel,
        rows=rows,
        tile_rows=tile_rows,
        blocks_per_core=blocks_per_core,
        needs_mask=needs_mask,
    )

    loss_parts, mask_parts = pl.pallas_call(
        kernel,
        out_shape=(
            jax.ShapeDtypeStruct((_NUM_CORES, _SUBLANES, _LANES), jnp.float32),
            jax.ShapeDtypeStruct((_NUM_CORES, _SUBLANES, _LANES), jnp.float32),
        ),
        grid_spec=pltpu.PrefetchScalarGridSpec(
            num_scalar_prefetch=0,
            grid=(_NUM_CORES, blocks_per_core),
            in_specs=[
                pl.BlockSpec((tile_rows, _LANES), in_map),
                pl.BlockSpec((tile_rows, _LANES), in_map),
            ],
            out_specs=[
                pl.BlockSpec((1, _SUBLANES, _LANES), lambda c, i: (c, 0, 0)),
                pl.BlockSpec((1, _SUBLANES, _LANES), lambda c, i: (c, 0, 0)),
            ],
        ),
        compiler_params=pltpu.CompilerParams(
            dimension_semantics=("parallel", "arbitrary"),
        ),
    )(p2d, l2d)

    # Tiny finalization in plain JAX: cross-lane reduce of 2x(8,128) slabs.
    loss_sum = jnp.sum(loss_parts)
    mask_sum = jnp.sum(mask_parts)
    return loss_sum / (mask_sum + 1.0)


def _ref_l2norm_loss(pred_map, label_map):
    diff = pred_map.astype(jnp.float32) - label_map.astype(jnp.float32)
    mask = (jnp.abs(diff) >= 0.1).astype(jnp.float32)
    n_effect = mask.sum() + 1.0
    loss = jnp.exp(label_map.astype(jnp.float32)) * mask * diff * diff
    return loss.sum() / n_effect


if __name__ == "__main__":
    key = jax.random.PRNGKey(0)
    k1, k2 = jax.random.split(key)
    # NCHW, small shapes: batch=2, channels=4, spatial=16x16
    pred_map = jax.random.normal(k1, (2, 4, 16, 16), dtype=jnp.float32)
    label_map = jax.random.normal(k2, (2, 4, 16, 16), dtype=jnp.float32)

    out = jax.block_until_ready(l2norm_loss(pred_map, label_map))
    ref = jax.block_until_ready(_ref_l2norm_loss(pred_map, label_map))

    assert jnp.allclose(out, ref, rtol=1e-5, atol=1e-5), (out, ref)
    print("KERNEL_OK")
</pallas_src>

<mosaic_0001>
module attributes {stable_mosaic.version = 11 : i64} {
  func.func @_l2norm_loss_kernel(%arg0: i32, %arg1: i32, %arg2: memref<16x128xf32, #tpu.memory_space<vmem>>, %arg3: memref<16x128xf32, #tpu.memory_space<vmem>>, %arg4: memref<1x8x128xf32, #tpu.memory_space<vmem>>, %arg5: memref<1x8x128xf32, #tpu.memory_space<vmem>>) attributes {dimension_semantics = [#tpu.dimension_semantics<parallel>, #tpu.dimension_semantics<arbitrary>], iteration_bounds = array<i64: 2, 1>, scalar_prefetch = 0 : i64, scratch_operands = 0 : i64, tpu.core_type = #tpu.core_type<tc>, window_params = [{transform_indices = @transform_0, window_bounds = array<i64: 16, 128>}, {transform_indices = @transform_1, window_bounds = array<i64: 16, 128>}, {transform_indices = @transform_2, window_bounds = array<i64: 1, 8, 128>}, {transform_indices = @transform_3, window_bounds = array<i64: 1, 8, 128>}]} {
    %c0_i32 = arith.constant 0 : i32
    %0 = arith.cmpi eq, %arg1, %c0_i32 : i32
    %1 = arith.extui %0 : i1 to i32
    %c0_i32_0 = arith.constant 0 : i32
    %2 = arith.cmpi ne, %1, %c0_i32_0 : i32
    scf.if %2 {
      %cst_22 = arith.constant 0.000000e+00 : f32
      %38 = vector.broadcast %cst_22 : f32 to vector<1x8x128xf32>
      %c0_23 = arith.constant 0 : index
      %c0_24 = arith.constant 0 : index
      %c0_25 = arith.constant 0 : index
      %39 = vector.load %arg4[%c0_23, %c0_24, %c0_25] : memref<1x8x128xf32, #tpu.memory_space<vmem>>, vector<1x8x128xf32>
      tpu.vector_store %arg4[%c0_23, %c0_24, %c0_25], %38 {strides = array<i32>} : memref<1x8x128xf32, #tpu.memory_space<vmem>>, vector<1x8x128xf32>,
      %cst_26 = arith.constant 0.000000e+00 : f32
      %40 = vector.broadcast %cst_26 : f32 to vector<1x8x128xf32>
      %c0_27 = arith.constant 0 : index
      %c0_28 = arith.constant 0 : index
      %c0_29 = arith.constant 0 : index
      %41 = vector.load %arg5[%c0_27, %c0_28, %c0_29] : memref<1x8x128xf32, #tpu.memory_space<vmem>>, vector<1x8x128xf32>
      tpu.vector_store %arg5[%c0_27, %c0_28, %c0_29], %40 {strides = array<i32>} : memref<1x8x128xf32, #tpu.memory_space<vmem>>, vector<1x8x128xf32>,
    } else {
    }
    %c0 = arith.constant 0 : index
    %c0_1 = arith.constant 0 : index
    %3 = vector.load %arg2[%c0, %c0_1] : memref<16x128xf32, #tpu.memory_space<vmem>>, vector<16x128xf32>
    %c0_2 = arith.constant 0 : index
    %c0_3 = arith.constant 0 : index
    %4 = vector.load %arg3[%c0_2, %c0_3] : memref<16x128xf32, #tpu.memory_space<vmem>>, vector<16x128xf32>
    %5 = arith.subf %3, %4 : vector<16x128xf32>
    %6 = math.absf %5 : vector<16x128xf32>
    %cst = arith.constant 1.000000e-01 : f32
    %7 = vector.broadcast %cst : f32 to vector<16x128xf32>
    %8 = arith.cmpf oge, %6, %7 : vector<16x128xf32>
    %c1_i32 = arith.constant 1 : i32
    %9 = arith.muli %arg0, %c1_i32 : i32
    %10 = arith.addi %9, %arg1 : i32
    %11 = tpu.iota {dimensions = array<i32: 0>} : vector<16x128xi32>
    %c16_i32 = arith.constant 16 : i32
    %12 = arith.muli %10, %c16_i32 : i32
    %13 = vector.broadcast %12 : i32 to vector<16x128xi32>
    %14 = arith.addi %13, %11 : vector<16x128xi32>
    %c16_i32_4 = arith.constant 16 : i32
    %15 = vector.broadcast %c16_i32_4 : i32 to vector<16x128xi32>
    %16 = arith.cmpi slt, %14, %15 : vector<16x128xi32>
    %17 = arith.andi %8, %16 : vector<16x128xi1>
    %18 = math.exp %4 : vector<16x128xf32>
    %19 = arith.mulf %18, %5 : vector<16x128xf32>
    %20 = arith.mulf %19, %5 : vector<16x128xf32>
    %cst_5 = arith.constant 0.000000e+00 : f32
    %21 = vector.broadcast %cst_5 : f32 to vector<16x128xf32>
    %22 = arith.select %17, %20, %21 : vector<16x128xi1>, vector<16x128xf32>
    %cst_6 = arith.constant 1.000000e+00 : f32
    %cst_7 = arith.constant 0.000000e+00 : f32
    %23 = vector.broadcast %cst_6 : f32 to vector<16x128xf32>
    %24 = vector.broadcast %cst_7 : f32 to vector<16x128xf32>
    %25 = arith.select %17, %23, %24 : vector<16x128xi1>, vector<16x128xf32>
    %c0_8 = arith.constant 0 : index
    %c0_9 = arith.constant 0 : index
    %c0_10 = arith.constant 0 : index
    %26 = vector.load %arg4[%c0_8, %c0_9, %c0_10] : memref<1x8x128xf32, #tpu.memory_space<vmem>>, vector<1x8x128xf32>
    %27 = vector.shape_cast %22 : vector<16x128xf32> to vector<2x8x128xf32>
    %cst_11 = arith.constant dense<0.000000e+00> : vector<8x128xf32>
    %28 = vector.multi_reduction <add>, %27, %cst_11 [0] : vector<2x8x128xf32> to vector<8x128xf32>
    %29 = vector.shape_cast %28 : vector<8x128xf32> to vector<1x8x128xf32>
    %30 = arith.addf %26, %29 : vector<1x8x128xf32>
    %c0_12 = arith.constant 0 : index
    %c0_13 = arith.constant 0 : index
    %c0_14 = arith.constant 0 : index
    %31 = vector.load %arg4[%c0_12, %c0_13, %c0_14] : memref<1x8x128xf32, #tpu.memory_space<vmem>>, vector<1x8x128xf32>
    tpu.vector_store %arg4[%c0_12, %c0_13, %c0_14], %30 {strides = array<i32>} : memref<1x8x128xf32, #tpu.memory_space<vmem>>, vector<1x8x128xf32>,
    %c0_15 = arith.constant 0 : index
    %c0_16 = arith.constant 0 : index
    %c0_17 = arith.constant 0 : index
    %32 = vector.load %arg5[%c0_15, %c0_16, %c0_17] : memref<1x8x128xf32, #tpu.memory_space<vmem>>, vector<1x8x128xf32>
    %33 = vector.shape_cast %25 : vector<16x128xf32> to vector<2x8x128xf32>
    %cst_18 = arith.constant dense<0.000000e+00> : vector<8x128xf32>
    %34 = vector.multi_reduction <add>, %33, %cst_18 [0] : vector<2x8x128xf32> to vector<8x128xf32>
    %35 = vector.shape_cast %34 : vector<8x128xf32> to vector<1x8x128xf32>
    %36 = arith.addf %32, %35 : vector<1x8x128xf32>
    %c0_19 = arith.constant 0 : index
    %c0_20 = arith.constant 0 : index
    %c0_21 = arith.constant 0 : index
    %37 = vector.load %arg5[%c0_19, %c0_20, %c0_21] : memref<1x8x128xf32, #tpu.memory_space<vmem>>, vector<1x8x128xf32>
    tpu.vector_store %arg5[%c0_19, %c0_20, %c0_21], %36 {strides = array<i32>} : memref<1x8x128xf32, #tpu.memory_space<vmem>>, vector<1x8x128xf32>,
    return
  }
  func.func @transform_0(%arg0: i32, %arg1: i32) -> (i32, i32) {
    %c1_i32 = arith.constant 1 : i32
    %0 = arith.muli %arg0, %c1_i32 : i32
    %1 = arith.addi %0, %arg1 : i32
    %c0_i32 = arith.constant 0 : i32
    %2 = arith.minsi %1, %c0_i32 : i32
    %c0_i32_0 = arith.constant 0 : i32
    %c0_i32_1 = arith.constant 0 : i32
    return %2, %c0_i32_0 : i32, i32
  }
  func.func @transform_1(%arg0: i32, %arg1: i32) -> (i32, i32) {
    %c1_i32 = arith.constant 1 : i32
    %0 = arith.muli %arg0, %c1_i32 : i32
    %1 = arith.addi %0, %arg1 : i32
    %c0_i32 = arith.constant 0 : i32
    %2 = arith.minsi %1, %c0_i32 : i32
    %c0_i32_0 = arith.constant 0 : i32
    %c0_i32_1 = arith.constant 0 : i32
    return %2, %c0_i32_0 : i32, i32
  }
  func.func @transform_2(%arg0: i32, %arg1: i32) -> (i32, i32, i32) {
    %c0_i32 = arith.constant 0 : i32
    %c0_i32_0 = arith.constant 0 : i32
    %c0_i32_1 = arith.constant 0 : i32
    return %arg0, %c0_i32, %c0_i32_0 : i32, i32, i32
  }
  func.func @transform_3(%arg0: i32, %arg1: i32) -> (i32, i32, i32) {
    %c0_i32 = arith.constant 0 : i32
    %c0_i32_0 = arith.constant 0 : i32
    %c0_i32_1 = arith.constant 0 : i32
    return %arg0, %c0_i32, %c0_i32_0 : i32, i32, i32
  }
}

</mosaic_0001>

<llo_original>
// kernel: tpu_custom_call.1
$region0: #{tpu_custom_call.1}
  #allocation0 [shape = 'u32[]', space=smem, size = 0x4, offset = 0x4, fixed_abs, tag = 'smem constant byte address 0x4 - core index']
  #allocation1 [shape = 'u32[144,128]{1,0:T(1,128)}', space=vmem, size = 0x12000, scoped, tag = 'internal scratch']
  %s0 = inlined_call_operand.hbm [shape: f32[16,128], index: 0, kind: input, shape index: {}]
  %s1 = inlined_call_operand.hbm [shape: f32[16,128], index: 1, kind: input, shape index: {}]
  %s2 = inlined_call_operand.hbm [shape: f32[2,8,128], index: 2, kind: output, shape index: {0}]
  %s3 = inlined_call_operand.hbm [shape: f32[2,8,128], index: 3, kind: output, shape index: {1}]
  %4 = xla_tuple %s2, %s3
  %s5 = sld [smem:[#allocation0]]
  $region61: #{tpu_custom_call.1} parent=0
    _
  %s7 = ssub.s32 1, %s5
  %s8 = scalar_select 0, %s7, %s5
  $region1: #{tpu_custom_call.1} parent=0
    #allocation2 [shape = 'u8[16384]{0}', space=vmem, size = 0x4000, scoped, tag = 'input window, operand 0']
    #allocation3 [shape = 's32[2]{0}', space=sflag, size = 0x8, scoped, tag = 'scoped memory for tpu_custom_call.1']
    #allocation4 [shape = 's32[2]{0}', space=sflag, size = 0x8, scoped, tag = 'scoped memory for tpu_custom_call.1']
    #allocation5 [shape = 'u8[16384]{0}', space=vmem, size = 0x4000, scoped, tag = 'input window, operand 1']
    #allocation6 [shape = 's32[2]{0}', space=sflag, size = 0x8, scoped, tag = 'scoped memory for tpu_custom_call.1']
    #allocation7 [shape = 'u8[8192]{0}', space=vmem, size = 0x2000, scoped, tag = 'output window, operand 0']
    #allocation8 [shape = 'u8[8192]{0}', space=vmem, size = 0x2000, scoped, tag = 'output window, operand 1']
    #allocation9 [shape = 's32[2]{0}', space=sflag, size = 0x8, scoped, tag = 'scoped memory for tpu_custom_call.1']
    %9 = vsyncpa [#allocation3], 0
    %s10 = scalar_lea.sflag [#allocation3], 1
    %11 = vsyncpa %s10, 0
    %12 = vsyncpa [#allocation6], 0
    %s13 = scalar_lea.sflag [#allocation6], 1
    %14 = vsyncpa %s13, 0
    %15 = vsyncpa [#allocation4], 0
    %s16 = scalar_lea.sflag [#allocation4], 1
    %17 = vsyncpa %s16, 0
    %18 = vsyncpa [#allocation9], 0
    %s19 = scalar_lea.sflag [#allocation9], 1
    %20 = vsyncpa %s19, 0
    loop: start=0, step=1, limit=4
    $region2: #{tpu_custom_call.1} parent=1 // loop_pre_header
      _
    $region3: #{tpu_custom_call.1} parent=1 // loop_header
      %s22 = sphi 0, %s26
      %p23 = scmp.ge.s32.totalorder %s22, 4
      %s29 = sphi 0, %s41
      %s30 = sphi 0, %s37
      %s31 = sphi 0, %s29
      %s32 = sphi 0, %s30
      %s33 = sphi 0, %s31
      %s34 = sphi 0, %s32
      %s50 = sphi 0, %s52
      %s53 = sphi 0, %s50
      %s54 = sphi 0, %s53
      %s70 = sphi 0, %s54
      %s82 = sphi 0, %s84
      %s85 = sphi 0, %s82
      %s86 = sphi 0, %s85
      %s102 = sphi 0, %s86
      %s108 = sphi 0, %s110
      %s111 = sphi 0, %s108
      %s112 = sphi 0, %s111
      %s128 = sphi 0, %s112
      %s134 = sphi 0, %s136
      %s137 = sphi 0, %s134
      %s138 = sphi 0, %s137
      %s154 = sphi 0, %s138
    $region4: #{tpu_custom_call.1} parent=1 // loop_header_branch
      %25 = sbr.rel (%p23) target = $region8
    $region5: #{tpu_custom_call.1} parent=1 // loop_body
      %s27 = ssub.s32 %s22, 1
      %s28 = ssub.s32 %s22, 2
      %s35 = sadd.s32 1, %s30
      %p36 = scmp.ge.s32.totalorder %s35, 1
      %s37 = scalar_select %p36, 0, %s35
      %s38 = sadd.s32 1, %s29
      %s39 = scalar_select %p36, %s38, %s29
      %p40 = scmp.ge.s32.totalorder %s39, 2
      %s41 = scalar_select %p40, 0, %s39
      %s42 = sadd.s32 %s29, %s30
      %p43 = scmp.lt.s32.totalorder %s42, 0
      %s44 = scalar_select %p43, %s42, 0
      %s45 = sadd.s32 %s41, %s37
      %p46 = scmp.lt.s32.totalorder %s45, 0
      %s47 = scalar_select %p46, %s45, 0
      %s48 = ssub.s32 %s44, %s47
      %p49 = scmp.eq.s32.totalorder %s48, 0
      %s51 = sadd.s32 %s50, 1
      %s52 = scalar_select %p49, %s50, %s51
      %p55 = pneg %p49
      %p56 = scmp.eq.s32.totalorder %s22, 1
      %p57 = por %p55, %p56
      %p58 = scmp.ne.s32.totalorder %s50, %s53
      %p59 = scmp.eq.s32.totalorder %s22, 0
      %p60 = por %p58, %p59
      %p61 = scmp.ne.s32.totalorder %s50, %s53
      %p62 = scmp.eq.s32.totalorder %s27, 1
      %p63 = por %p61, %p62
      %p64 = scmp.ne.s32.totalorder %s53, %s54
      %p65 = scmp.eq.s32.totalorder %s27, 0
      %p66 = por %p64, %p65
      %p67 = scmp.ne.s32.totalorder %s53, %s54
      %p68 = scmp.eq.s32.totalorder %s28, 1
      %p69 = por %p67, %p68
      %p71 = scmp.ne.s32.totalorder %s54, %s70
      %p72 = scmp.eq.s32.totalorder %s28, 0
      %p73 = por %p71, %p72
      %s74 = sadd.s32 %s29, %s30
      %p75 = scmp.lt.s32.totalorder %s74, 0
      %s76 = scalar_select %p75, %s74, 0
      %s77 = sadd.s32 %s41, %s37
      %p78 = scmp.lt.s32.totalorder %s77, 0
      %s79 = scalar_select %p78, %s77, 0
      %s80 = ssub.s32 %s76, %s79
      %p81 = scmp.eq.s32.totalorder %s80, 0
      %s83 = sadd.s32 %s82, 1
      %s84 = scalar_select %p81, %s82, %s83
      %p87 = pneg %p81
      %p88 = scmp.eq.s32.totalorder %s22, 1
      %p89 = por %p87, %p88
      %p90 = scmp.ne.s32.totalorder %s82, %s85
      %p91 = scmp.eq.s32.totalorder %s22, 0
      %p92 = por %p90, %p91
      %p93 = scmp.ne.s32.totalorder %s82, %s85
      %p94 = scmp.eq.s32.totalorder %s27, 1
      %p95 = por %p93, %p94
      %p96 = scmp.ne.s32.totalorder %s85, %s86
      %p97 = scmp.eq.s32.totalorder %s27, 0
      %p98 = por %p96, %p97
      %p99 = scmp.ne.s32.totalorder %s85, %s86
      %p100 = scmp.eq.s32.totalorder %s28, 1
      %p101 = por %p99, %p100
      %p103 = scmp.ne.s32.totalorder %s86, %s102
      %p104 = scmp.eq.s32.totalorder %s28, 0
      %p105 = por %p103, %p104
      %s106 = ssub.s32 %s29, %s41
      %p107 = scmp.eq.s32.totalorder %s106, 0
      %s109 = sadd.s32 %s108, 1
      %s110 = scalar_select %p107, %s108, %s109
      %p113 = pneg %p107
      %p114 = scmp.eq.s32.totalorder %s22, 1
      %p115 = por %p113, %p114
      %p116 = scmp.ne.s32.totalorder %s108, %s111
      %p117 = scmp.eq.s32.totalorder %s22, 0
      %p118 = por %p116, %p117
      %p119 = scmp.ne.s32.totalorder %s108, %s111
      %p120 = scmp.eq.s32.totalorder %s27, 1
      %p121 = por %p119, %p120
      %p122 = scmp.ne.s32.totalorder %s111, %s112
      %p123 = scmp.eq.s32.totalorder %s27, 0
      %p124 = por %p122, %p123
      %p125 = scmp.ne.s32.totalorder %s111, %s112
      %p126 = scmp.eq.s32.totalorder %s28, 1
      %p127 = por %p125, %p126
      %p129 = scmp.ne.s32.totalorder %s112, %s128
      %p130 = scmp.eq.s32.totalorder %s28, 0
      %p131 = por %p129, %p130
      %s132 = ssub.s32 %s29, %s41
      %p133 = scmp.eq.s32.totalorder %s132, 0
      %s135 = sadd.s32 %s134, 1
      %s136 = scalar_select %p133, %s134, %s135
      %p139 = pneg %p133
      %p140 = scmp.eq.s32.totalorder %s22, 1
      %p141 = por %p139, %p140
      %p142 = scmp.ne.s32.totalorder %s134, %s137
      %p143 = scmp.eq.s32.totalorder %s22, 0
      %p144 = por %p142, %p143
      %p145 = scmp.ne.s32.totalorder %s134, %s137
      %p146 = scmp.eq.s32.totalorder %s27, 1
      %p147 = por %p145, %p146
      %p148 = scmp.ne.s32.totalorder %s137, %s138
      %p149 = scmp.eq.s32.totalorder %s27, 0
      %p150 = por %p148, %p149
      %p151 = scmp.ne.s32.totalorder %s137, %s138
      %p152 = scmp.eq.s32.totalorder %s28, 1
      %p153 = por %p151, %p152
      %p155 = scmp.ne.s32.totalorder %s138, %s154
      %p156 = scmp.eq.s32.totalorder %s28, 0
      %p157 = por %p155, %p156
      %p158 = scmp.le.s32.totalorder 1, %s22
      %p159 = scmp.lt.s32.totalorder %s22, 3
      %p160 = pnand %p158, %p159
      %p161 = pneg %p160
      // Predicated region
      $region9: #{tpu_custom_call.1} parent=5 // pred_check
        _
      $region10: #{tpu_custom_call.1} parent=5 // pred_check_branch
        %163 = sbr.rel (%p160) target = $region12
      $region11: #{tpu_custom_call.1} parent=5 // pred_region
        %s164 = ssub.s32 %s22, 1
      $region12: #{tpu_custom_call.1} parent=5 // pred_fallthru
        _
      %p165 = scmp.lt.s32.totalorder %s22, 2
      // Predicated region
      $region13: #{tpu_custom_call.1} parent=5 // pred_check
        %p166 = pneg %p165
      $region14: #{tpu_custom_call.1} parent=5 // pred_check_branch
        %168 = sbr.rel (%p166) target = $region16
      $region15: #{tpu_custom_call.1} parent=5 // pred_region
        // Predicated region
        $region17: #{tpu_custom_call.1} parent=15 // pred_check
          %p169 = pneg %p60
        $region18: #{tpu_custom_call.1} parent=15 // pred_check_branch
          %171 = sbr.rel (%p169) target = $region20
        $region19: #{tpu_custom_call.1} parent=15 // pred_region
          %s172 = sand.u32 %s50, 1
          %s173 = scalar_lea.sflag [#allocation3], %s172
          %s174 = sand.u32 %s50, 1
          %s175 = smul.addr %s174, 16
          %s176 = scalar_lea.vmem [#allocation2], %s175
          %s177 = sadd.s32 %s29, %s30
          %p178 = scmp.lt.s32.totalorder %s177, 0
          %s179 = scalar_select %p178, %s177, 0
          %s180 = smul.u32 2, %s179
          %s182 = ssub.s32 256, 256
          %183 = vsyncadd %s173, %s182
          %s184 = smul.addr %s180, 128
          %s185 = scalar_lea.hbm %s0, %s184
          %s186 = sshll.u32 %s176, 4
          %s187 = int_to_ptr.vmem [resolvable:$true] %s186
          %192 = dma.hbm_to_vmem [thread:$0]  %s185, 256, %s187, %s173, 128, 128, 8
        $region20: #{tpu_custom_call.1} parent=15 // pred_fallthru
          _
        // Predicated region
        $region21: #{tpu_custom_call.1} parent=15 // pred_check
          %p193 = pneg %p92
        $region22: #{tpu_custom_call.1} parent=15 // pred_check_branch
          %195 = sbr.rel (%p193) target = $region24
        $region23: #{tpu_custom_call.1} parent=15 // pred_region
          %s196 = sand.u32 %s82, 1
          %s197 = scalar_lea.sflag [#allocation6], %s196
          %s198 = sand.u32 %s82, 1
          %s199 = smul.addr %s198, 16
          %s200 = scalar_lea.vmem [#allocation5], %s199
          %s201 = sadd.s32 %s29, %s30
          %p202 = scmp.lt.s32.totalorder %s201, 0
          %s203 = scalar_select %p202, %s201, 0
          %s204 = smul.u32 2, %s203
          %s206 = ssub.s32 256, 256
          %207 = vsyncadd %s197, %s206
          %s208 = smul.addr %s204, 128
          %s209 = scalar_lea.hbm %s1, %s208
          %s210 = sshll.u32 %s200, 4
          %s211 = int_to_ptr.vmem [resolvable:$true] %s210
          %216 = dma.hbm_to_vmem [thread:$0]  %s209, 256, %s211, %s197, 128, 128, 8
        $region24: #{tpu_custom_call.1} parent=15 // pred_fallthru
          _
      $region16: #{tpu_custom_call.1} parent=5 // pred_fallthru
        _
      %p217 = scmp.le.s32.totalorder 1, %s22
      %p218 = scmp.lt.s32.totalorder %s22, 3
      %p219 = pnand %p217, %p218
      %p220 = pneg %p219
      // Predicated region
      $region25: #{tpu_custom_call.1} parent=5 // pred_check
        _
      $region26: #{tpu_custom_call.1} parent=5 // pred_check_branch
        %222 = sbr.rel (%p219) target = $region28
      $region27: #{tpu_custom_call.1} parent=5 // pred_region
        %s223 = ssub.s32 %s22, 1
        %s224 = sand.u32 %s53, 1
        %s225 = scalar_lea.sflag [#allocation3], %s224
        %s226 = sand.u32 %s53, 1
        %s227 = smul.addr %s226, 16
        %s228 = scalar_lea.vmem [#allocation2], %s227
        // Predicated region
        $region29: #{tpu_custom_call.1} parent=27 // pred_check
          %p229 = pneg %p66
        $region30: #{tpu_custom_call.1} parent=27 // pred_check_branch
          %231 = sbr.rel (%p229) target = $region32
        $region31: #{tpu_custom_call.1} parent=27 // pred_region
          %232 = dma.done %s225, 256
        $region32: #{tpu_custom_call.1} parent=27 // pred_fallthru
          _
        %s233 = sand.u32 %s85, 1
        %s234 = scalar_lea.sflag [#allocation6], %s233
        %s235 = sand.u32 %s85, 1
        %s236 = smul.addr %s235, 16
        %s237 = scalar_lea.vmem [#allocation5], %s236
        // Predicated region
        $region33: #{tpu_custom_call.1} parent=27 // pred_check
          %p238 = pneg %p98
        $region34: #{tpu_custom_call.1} parent=27 // pred_check_branch
          %240 = sbr.rel (%p238) target = $region36
        $region35: #{tpu_custom_call.1} parent=27 // pred_region
          %241 = dma.done %s234, 256
        $region36: #{tpu_custom_call.1} parent=27 // pred_fallthru
          _
        %s242 = sand.u32 %s53, 1
        %s243 = scalar_lea.sflag [#allocation3], %s242
        %s244 = sand.u32 %s53, 1
        %s245 = smul.addr %s244, 16
        %s246 = scalar_lea.vmem [#allocation2], %s245
        %p247 = pneg %p66
        %p248 = pneg %p63
        %s249 = sand.u32 %s85, 1
        %s250 = scalar_lea.sflag [#allocation6], %s249
        %s251 = sand.u32 %s85, 1
        %s252 = smul.addr %s251, 16
        %s253 = scalar_lea.vmem [#allocation5], %s252
        %p254 = pneg %p98
        %p255 = pneg %p95
        %p256 = pneg %p124
        %p257 = pneg %p121
        %s258 = sand.u32 %s111, 1
        %s259 = scalar_lea.sflag [#allocation4], %s258
        %s260 = sand.u32 %s111, 1
        %s261 = smul.addr %s260, 8
        %s262 = scalar_lea.vmem [#allocation7], %s261
        %p263 = pneg %p150
        %p264 = pneg %p147
        %s265 = sand.u32 %s137, 1
        %s266 = scalar_lea.sflag [#allocation9], %s265
        %s267 = sand.u32 %s137, 1
        %s268 = smul.addr %s267, 8
        %s269 = scalar_lea.vmem [#allocation8], %s268
        %s270 = sadd.s32 %s31, %s32
        %p271 = scmp.lt.s32.totalorder %s270, 0
        %s272 = scalar_select %p271, %s270, 0
        %s273 = smul.u32 2, %s272
        %s274 = sadd.s32 %s31, %s32
        %p275 = scmp.lt.s32.totalorder %s274, 0
        %s276 = scalar_select %p275, %s274, 0
        %s277 = smul.u32 2, %s276
        %p278 = scmp.eq.s32.totalorder %s32, 0
        // Predicated region
        $region37: #{tpu_custom_call.1} parent=27 // pred_check
          %p279 = pneg %p278
        $region38: #{tpu_custom_call.1} parent=27 // pred_check_branch
          %281 = sbr.rel (%p279) target = $region40
        $region39: #{tpu_custom_call.1} parent=27 // pred_region
          %282 = vst [vmem:[%s262] sm:$0xff] 0.0
          %283 = vst [vmem:[%s269] sm:$0xff] 0.0
        $region40: #{tpu_custom_call.1} parent=27 // pred_fallthru
          _
        %v284 = vld [vmem:[%s228] sm:$0xff]
        %v285 = vld [vmem:[%s228 + $0x8] sm:$0xff]
        %v286 = vld [vmem:[%s237] sm:$0xff]
        %v287 = vld [vmem:[%s237 + $0x8] sm:$0xff]
        %v288 = vsub.f32 %v284, %v286
        %v289 = vsub.f32 %v285, %v287
        %v290 = vand.u32 2147483647, %v288
        %v291 = vand.u32 2147483647, %v289
        %vm292 = vcmp.ge.f32.partialorder %v290, 0.1
        %vm293 = vcmp.ge.f32.partialorder %v291, 0.1
        %s294 = sadd.s32 %s31, %s32
        %v295 = vlaneseq
        %v296 = vshrl.u32 %v295, 7
        %v297 = vadd.s32 %v296, 8
        %s298 = smul.u32 %s294, 16
        %v299 = vstv %s298
        %v300 = vadd.s32 %v299, %v296
        %v301 = vadd.s32 %v299, %v297
        %vm302 = vcmp.lt.s32.totalorder %v300, 16
        %vm303 = vcmp.lt.s32.totalorder %v301, 16
        %vm304 = vmand %vm292, %vm302
        %vm305 = vmand %vm293, %vm303
        %v306 = vmul.f32 %v286, 1.442695
        %v307 = vpow.pop %v306
        %v308 = vmul.f32 %v287, 1.442695
        %v309 = vpow.pop %v308
        %v310 = vmul.f32 %v307, %v288
        %v311 = vmul.f32 %v309, %v289
        %v312 = vmul.f32 %v310, %v288
        %v313 = vmul.f32 %v311, %v289
        %v314 = vsel %vm304, %v312, 0.0
        %v315 = vsel %vm305, %v313, 0.0
        %v316 = vsel %vm304, 1.0, 0.0
        %v317 = vsel %vm305, 1.0, 0.0
        %v318 = vld [vmem:[%s262] sm:$0xff]
        %v319 = vadd.f32 %v314, %v315
        %v320 = vadd.f32 %v318, %v319
        %321 = vst [vmem:[%s262] sm:$0xff] %v320
        %v322 = vld [vmem:[%s269] sm:$0xff]
        %v323 = vadd.f32 %v316, %v317
        %v324 = vadd.f32 %v322, %v323
        %325 = vst [vmem:[%s269] sm:$0xff] %v324
        %s326 = sand.u32 %s111, 1
        %s327 = scalar_lea.sflag [#allocation4], %s326
        %s328 = sand.u32 %s111, 1
        %s329 = smul.addr %s328, 8
        %s330 = scalar_lea.vmem [#allocation7], %s329
        %s331 = sand.u32 %s137, 1
        %s332 = scalar_lea.sflag [#allocation9], %s331
        %s333 = sand.u32 %s137, 1
        %s334 = smul.addr %s333, 8
        %s335 = scalar_lea.vmem [#allocation8], %s334
        // Predicated region
        $region41: #{tpu_custom_call.1} parent=27 // pred_check
          %p336 = pneg %p121
        $region42: #{tpu_custom_call.1} parent=27 // pred_check_branch
          %338 = sbr.rel (%p336) target = $region44
        $region43: #{tpu_custom_call.1} parent=27 // pred_region
          %s340 = ssub.s32 128, 128
          %341 = vsyncadd %s327, %s340
          %s342 = smul.addr %s31, 128
          %s343 = scalar_lea.hbm %s2, %s342
          %s345 = sshll.u32 %s330, 4
          %s346 = int_to_ptr.vmem [resolvable:$true] %s345
          %348 = dma.vmem_to_hbm [thread:$0]  %s346, 128, %s343, %s327
        $region44: #{tpu_custom_call.1} parent=27 // pred_fallthru
          _
        // Predicated region
        $region45: #{tpu_custom_call.1} parent=27 // pred_check
          %p349 = pneg %p147
        $region46: #{tpu_custom_call.1} parent=27 // pred_check_branch
          %351 = sbr.rel (%p349) target = $region48
        $region47: #{tpu_custom_call.1} parent=27 // pred_region
          %s353 = ssub.s32 128, 128
          %354 = vsyncadd %s332, %s353
          %s355 = smul.addr %s31, 128
          %s356 = scalar_lea.hbm %s3, %s355
          %s358 = sshll.u32 %s335, 4
          %s359 = int_to_ptr.vmem [resolvable:$true] %s358
          %361 = dma.vmem_to_hbm [thread:$0]  %s359, 128, %s356, %s332
        $region48: #{tpu_custom_call.1} parent=27 // pred_fallthru
          _
      $region28: #{tpu_custom_call.1} parent=5 // pred_fallthru
        _
      %p362 = scmp.le.s32.totalorder 2, %s22
      // Predicated region
      $region49: #{tpu_custom_call.1} parent=5 // pred_check
        %p363 = pneg %p362
      $region50: #{tpu_custom_call.1} parent=5 // pred_check_branch
        %365 = sbr.rel (%p363) target = $region52
      $region51: #{tpu_custom_call.1} parent=5 // pred_region
        %s366 = ssub.s32 %s22, 2
        // Predicated region
        $region53: #{tpu_custom_call.1} parent=51 // pred_check
          %p367 = pneg %p127
        $region54: #{tpu_custom_call.1} parent=51 // pred_check_branch
          %369 = sbr.rel (%p367) target = $region56
        $region55: #{tpu_custom_call.1} parent=51 // pred_region
          %s370 = sand.u32 %s112, 1
          %s371 = scalar_lea.sflag [#allocation4], %s370
          %s372 = sand.u32 %s112, 1
          %s373 = smul.addr %s372, 8
          %s374 = scalar_lea.vmem [#allocation7], %s373
          %375 = dma.done %s371, 128
        $region56: #{tpu_custom_call.1} parent=51 // pred_fallthru
          _
        // Predicated region
        $region57: #{tpu_custom_call.1} parent=51 // pred_check
          %p376 = pneg %p153
        $region58: #{tpu_custom_call.1} parent=51 // pred_check_branch
          %378 = sbr.rel (%p376) target = $region60
        $region59: #{tpu_custom_call.1} parent=51 // pred_region
          %s379 = sand.u32 %s138, 1
          %s380 = scalar_lea.sflag [#allocation9], %s379
          %s381 = sand.u32 %s138, 1
          %s382 = smul.addr %s381, 8
          %s383 = scalar_lea.vmem [#allocation8], %s382
          %384 = dma.done %s380, 128
        $region60: #{tpu_custom_call.1} parent=51 // pred_fallthru
          _
      $region52: #{tpu_custom_call.1} parent=5 // pred_fallthru
        _
    $region6: #{tpu_custom_call.1} parent=1 // loop_footer
      %s26 = sadd.s32 1, %s22
    $region7: #{tpu_custom_call.1} parent=1 // loop_footer_branch
      %21 = sbr.rel target = $region3
    $region8: #{tpu_custom_call.1} parent=1 // loop_exit
      _
    %385 = vsyncpa [#allocation3], 1
    %s386 = scalar_lea.sflag [#allocation3], 1
    %387 = vsyncpa %s386, 1
    %388 = vsyncpa [#allocation6], 1
    %s389 = scalar_lea.sflag [#allocation6], 1
    %390 = vsyncpa %s389, 1
    %391 = vsyncpa [#allocation4], 1
    %s392 = scalar_lea.sflag [#allocation4], 1
    %393 = vsyncpa %s392, 1
    %394 = vsyncpa [#allocation9], 1
    %s395 = scalar_lea.sflag [#allocation9], 1
    %396 = vsyncpa %s395, 1

</llo_original>
